<compile_context>
chip_gen: v5e
topology: v5e:2x2
jax: 0.10.0
libtpu: 0.0.40
codegen_flags: <defaults>
</compile_context>

<pallas_src>
import numpy as np
import jax
import jax.numpy as jnp
from jax.experimental import pallas as pl
from jax.experimental.pallas import tpu as pltpu

_LANE = 128


# ---------------------------------------------------------------------------
# Schedule precomputation (host-side glue, same math as the PyTorch module)
# ---------------------------------------------------------------------------
def cosine_beta_schedule(timesteps, s=0.008, raise_to_power: float = 1):
    steps = timesteps + 2
    x = np.linspace(0, steps, steps)
    alphas_cumprod = np.cos((x / steps + s) / (1 + s) * np.pi * 0.5) ** 2
    alphas_cumprod = alphas_cumprod / alphas_cumprod[0]
    betas = 1 - alphas_cumprod[1:] / alphas_cumprod[:-1]
    betas = np.clip(betas, a_min=0, a_max=0.999)
    alphas = 1.0 - betas
    alphas_cumprod = np.cumprod(alphas, axis=0)
    if raise_to_power != 1:
        alphas_cumprod = np.power(alphas_cumprod, raise_to_power)
    return alphas_cumprod


def clip_noise_schedule(alphas2, clip_value=0.001):
    alphas2 = np.concatenate([np.ones(1), alphas2], axis=0)
    alphas_step = alphas2[1:] / alphas2[:-1]
    alphas_step = np.clip(alphas_step, a_min=clip_value, a_max=1.0)
    alphas2 = np.cumprod(alphas_step, axis=0)
    return alphas2


def polynomial_schedule(timesteps: int, s=0.0001, power=3.0):
    steps = timesteps + 1
    x = np.linspace(0, steps, steps)
    alphas2 = (1 - np.power(x / steps, power)) ** 2
    alphas2 = clip_noise_schedule(alphas2, clip_value=0.001)
    precision = 1 - 2 * s
    alphas2 = precision * alphas2 + s
    return alphas2


def build_gamma_table(noise_schedule: str, timesteps: int, precision: float) -> np.ndarray:
    if noise_schedule == "cosine":
        alphas2 = cosine_beta_schedule(timesteps)
    elif "polynomial" in noise_schedule:
        splits = noise_schedule.split("_")
        assert len(splits) == 2
        power = float(splits[1])
        alphas2 = polynomial_schedule(timesteps, s=precision, power=power)
    else:
        raise ValueError(noise_schedule)
    sigmas2 = 1 - alphas2
    log_alphas2 = np.log(alphas2)
    log_sigmas2 = np.log(sigmas2)
    log_alphas2_to_sigmas2 = log_alphas2 - log_sigmas2
    gamma = (-log_alphas2_to_sigmas2).astype(np.float32)  # shape (timesteps + 1,)
    return gamma


# ---------------------------------------------------------------------------
# Pallas kernel: t -> clamp(round(t * timesteps)) -> gamma[t_int]
#   layout: batch on the lane axis; table index on the sublane axis.
#   t_ref     (1, TB)       float32
#   gamma_ref (T_pad, 128)  float32, lane-replicated table (resident)
#   out_ref   (1, TB)       float32
# ---------------------------------------------------------------------------
def _make_lookup_kernel(timesteps: int, t_pad: int, tb: int):
    ts_f = float(timesteps)
    reps = tb // _LANE

    def kernel(t_ref, gamma_ref, out_ref):
        t = t_ref[...]                                                     # (1, TB)
        t_int = jnp.clip(jnp.round(t * ts_f).astype(jnp.int32), 0, timesteps)
        row_ids = jax.lax.broadcasted_iota(jnp.int32, (t_pad, 1), 0)       # (T_pad, 1)
        g = gamma_ref[...]                                                 # (T_pad, 128)
        if reps > 1:
            # lane-axis replication of the already lane-broadcast table
            g = jnp.concatenate([g] * reps, axis=1)                        # (T_pad, TB)
        sel = jnp.where(t_int == row_ids, g, 0.0)                          # (T_pad, TB)
        out_ref[...] = jnp.sum(sel, axis=0, keepdims=True)                 # (1, TB)

    return kernel


class PredefinedNoiseSchedulePallas:
    """JAX/Pallas equivalent of the PyTorch PredefinedNoiseSchedule module."""

    def __init__(self, noise_schedule: str, timesteps: int, precision: float,
                 *, vmem_budget_bytes: int = 16 << 20):
        self.timesteps = timesteps
        gamma_np = build_gamma_table(noise_schedule, timesteps, precision)
        self.gamma = jnp.asarray(gamma_np)                       # (timesteps + 1,)

        n = timesteps + 1
        t_pad = int(pl.cdiv(n, _LANE) * _LANE)
        self._t_pad = t_pad

        # Lane pre-broadcast table (T_pad, 128): same tiled HBM/VMEM footprint
        # as a (T_pad, 1) column, but the kernel needs no XLU lane-broadcasts.
        col = np.zeros((t_pad,), dtype=np.float32)
        col[:n] = gamma_np
        self._gamma128 = jnp.asarray(np.repeat(col[:, None], _LANE, axis=1))

        # Batch-tile cap: keep the live (T_pad, TB) intermediates (select
        # result + replicated table) within the VMEM budget (v7x-safe).
        cap = (vmem_budget_bytes // (8 * t_pad)) // _LANE * _LANE
        self._tb_cap = int(max(_LANE, min(8192, cap)))
        self._kernels = {}

    def _kernel_for(self, tb: int):
        k = self._kernels.get(tb)
        if k is None:
            k = _make_lookup_kernel(self.timesteps, self._t_pad, tb)
            self._kernels[tb] = k
        return k

    def __call__(self, t: jax.Array) -> jax.Array:
        # t: (B,) or (B, 1) float32 in [0, 1]; output has the same shape.
        orig_shape = t.shape
        tf = jnp.reshape(t, (-1,)).astype(jnp.float32)
        b = tf.shape[0]

        # Pad only to the next multiple of 128 lanes; single grid step when
        # it fits the cap, otherwise split into equal 128-aligned tiles.
        b128 = int(pl.cdiv(b, _LANE) * _LANE)
        if b128 <= self._tb_cap:
            tb, b_pad = b128, b128
        else:
            n_steps = int(pl.cdiv(b128, self._tb_cap))
            tb = int(pl.cdiv(b128 // _LANE, n_steps)) * _LANE
            b_pad = tb * n_steps

        if b_pad != b:
            tf = jnp.pad(tf, (0, b_pad - b))
        tf = tf.reshape(1, b_pad)
        t_pad = self._t_pad

        out = pl.pallas_call(
            self._kernel_for(tb),
            out_shape=jax.ShapeDtypeStruct((1, b_pad), jnp.float32),
            grid=(b_pad // tb,),
            in_specs=[
                pl.BlockSpec((1, tb), lambda i: (0, i)),
                pl.BlockSpec((t_pad, _LANE), lambda i: (0, 0)),   # table resident
            ],
            out_specs=pl.BlockSpec((1, tb), lambda i: (0, i)),
            compiler_params=pltpu.CompilerParams(
                dimension_semantics=("parallel",),
                vmem_limit_bytes=32 << 20,
            ),
            cost_estimate=pl.CostEstimate(
                flops=3 * b_pad * t_pad,
                transcendentals=0,
                bytes_accessed=4 * (2 * b_pad + t_pad * _LANE),
            ),
        )(tf, self._gamma128)

        return out[0, :b].reshape(orig_shape)


# ---------------------------------------------------------------------------
# Demo / correctness check
# ---------------------------------------------------------------------------
if __name__ == "__main__":
    key = jax.random.PRNGKey(0)
    k1, k2, k3 = jax.random.split(key, 3)

    def _ref(sched, t):
        t_int = jnp.clip(jnp.round(t * sched.timesteps).astype(jnp.int32),
                         0, sched.timesteps)
        return jnp.take(sched.gamma, t_int[:, 0], axis=0)[:, None]

    # Case 1: polynomial schedule, timesteps=50, small batch (single lane tile).
    sched = PredefinedNoiseSchedulePallas("polynomial_2", 50, 1e-4)
    t1 = jax.random.uniform(k1, (8, 1), dtype=jnp.float32)
    out1 = jax.block_until_ready(sched(t1))
    np.testing.assert_allclose(np.asarray(out1), np.asarray(_ref(sched, t1)),
                               rtol=1e-6, atol=1e-6)
    assert out1.shape == (8, 1) and out1.dtype == jnp.float32

    # Case 2: cosine schedule, timesteps=1000, odd batch (padding path).
    sched2 = PredefinedNoiseSchedulePallas("cosine", 1000, 1e-5)
    t2 = jax.random.uniform(k2, (13, 1), dtype=jnp.float32)
    out2 = jax.block_until_ready(sched2(t2))
    np.testing.assert_allclose(np.asarray(out2), np.asarray(_ref(sched2, t2)),
                               rtol=1e-6, atol=1e-6)

    # Case 3: batch > 128 exercises the multi-lane-group (reps > 1) path.
    t3 = jax.random.uniform(k3, (300, 1), dtype=jnp.float32)
    out3 = jax.block_until_ready(sched2(t3))
    np.testing.assert_allclose(np.asarray(out3), np.asarray(_ref(sched2, t3)),
                               rtol=1e-6, atol=1e-6)
    assert out3.shape == (300, 1)

    print("KERNEL_OK")
</pallas_src>

<mosaic_0001>
module attributes {stable_mosaic.version = 11 : i64} {
  func.func @kernel(%arg0: i32, %arg1: memref<1x128xf32, #tpu.memory_space<vmem>>, %arg2: memref<128x128xf32, #tpu.memory_space<vmem>>, %arg3: memref<1x128xf32, #tpu.memory_space<vmem>>) attributes {dimension_semantics = [#tpu.dimension_semantics<parallel>], iteration_bounds = array<i64: 1>, scalar_prefetch = 0 : i64, scratch_operands = 0 : i64, tpu.core_type = #tpu.core_type<tc>, window_params = [{transform_indices = @transform_0, window_bounds = array<i64: 1, 128>}, {pipeline_mode = #tpu.pipeline_mode<synchronous>, transform_indices = @transform_1, window_bounds = array<i64: 128, 128>}, {transform_indices = @transform_2, window_bounds = array<i64: 1, 128>}]} {
    %c0 = arith.constant 0 : index
    %c0_0 = arith.constant 0 : index
    %0 = vector.load %arg1[%c0, %c0_0] : memref<1x128xf32, #tpu.memory_space<vmem>>, vector<1x128xf32>
    %cst = arith.constant 5.000000e+01 : f32
    %1 = vector.broadcast %cst : f32 to vector<1x128xf32>
    %2 = arith.mulf %0, %1 : vector<1x128xf32>
    %3 = math.roundeven %2 : vector<1x128xf32>
    %4 = arith.fptosi %3 : vector<1x128xf32> to vector<1x128xi32>
    %c0_i32 = arith.constant 0 : i32
    %c50_i32 = arith.constant 50 : i32
    %5 = vector.broadcast %c0_i32 : i32 to vector<1x128xi32>
    %6 = arith.maxsi %5, %4 : vector<1x128xi32>
    %7 = vector.broadcast %c50_i32 : i32 to vector<1x128xi32>
    %8 = arith.minsi %7, %6 : vector<1x128xi32>
    %9 = tpu.iota {dimensions = array<i32: 0>} : vector<128x1xi32>
    %c0_1 = arith.constant 0 : index
    %c0_2 = arith.constant 0 : index
    %10 = vector.load %arg2[%c0_1, %c0_2] : memref<128x128xf32, #tpu.memory_space<vmem>>, vector<128x128xf32>
    %11 = vector.broadcast %8 : vector<1x128xi32> to vector<128x128xi32>
    %12 = vector.broadcast %9 : vector<128x1xi32> to vector<128x128xi32>
    %13 = arith.cmpi eq, %11, %12 : vector<128x128xi32>
    %cst_3 = arith.constant 0.000000e+00 : f32
    %14 = vector.broadcast %cst_3 : f32 to vector<128x128xf32>
    %15 = arith.select %13, %10, %14 : vector<128x128xi1>, vector<128x128xf32>
    %cst_4 = arith.constant dense<0.000000e+00> : vector<128xf32>
    %16 = vector.multi_reduction <add>, %15, %cst_4 [0] : vector<128x128xf32> to vector<128xf32>
    %17 = vector.shape_cast %16 : vector<128xf32> to vector<1x128xf32>
    %c0_5 = arith.constant 0 : index
    %c0_6 = arith.constant 0 : index
    %18 = vector.load %arg3[%c0_5, %c0_6] : memref<1x128xf32, #tpu.memory_space<vmem>>, vector<1x128xf32>
    tpu.vector_store %arg3[%c0_5, %c0_6], %17 {strides = array<i32>} : memref<1x128xf32, #tpu.memory_space<vmem>>, vector<1x128xf32>,
    return
  }
  func.func @transform_0(%arg0: i32) -> (i32, i32) {
    %c0_i32 = arith.constant 0 : i32
    %c0_i32_0 = arith.constant 0 : i32
    return %c0_i32, %arg0 : i32, i32
  }
  func.func @transform_1(%arg0: i32) -> (i32, i32) {
    %c0_i32 = arith.constant 0 : i32
    %c0_i32_0 = arith.constant 0 : i32
    %c0_i32_1 = arith.constant 0 : i32
    return %c0_i32, %c0_i32_0 : i32, i32
  }
  func.func @transform_2(%arg0: i32) -> (i32, i32) {
    %c0_i32 = arith.constant 0 : i32
    %c0_i32_0 = arith.constant 0 : i32
    return %c0_i32, %arg0 : i32, i32
  }
}

</mosaic_0001>

<llo_original>
// kernel: tpu_custom_call.1
$region0: #{tpu_custom_call.1}
  #allocation0 [shape = 'u32[]', space=smem, size = 0x4, offset = 0x4, fixed_abs, tag = 'smem constant byte address 0x4 - core index']
  #allocation1 [shape = 'u32[72,128]{1,0:T(1,128)}', space=vmem, size = 0x9000, scoped, tag = 'internal scratch']
  %s0 = inlined_call_operand.hbm [shape: f32[1,128], index: 0, kind: input, shape index: {}]
  %s1 = inlined_call_operand.hbm [shape: f32[128,128], index: 1, kind: input, shape index: {}]
  %s2 = inlined_call_operand.hbm [shape: f32[1,128], index: 2, kind: output, shape index: {}]
  %s3 = sld [smem:[#allocation0]]
  $region26: #{tpu_custom_call.1} parent=0
    _
  %s5 = ssub.s32 1, %s3
  %s6 = scalar_select 0, %s5, %s3
  $region1: #{tpu_custom_call.1} parent=0
    #allocation2 [shape = 'u8[512]{0}', space=vmem, size = 0x400, scoped, tag = 'input window, operand 0, single buffered']
    #allocation3 [shape = 's32[1]{0}', space=sflag, size = 0x4, scoped, tag = 'scoped memory for tpu_custom_call.1']
    #allocation4 [shape = 's32[1]{0}', space=sflag, size = 0x4, scoped, tag = 'scoped memory for tpu_custom_call.1']
    #allocation5 [shape = 'u8[65536]{0}', space=vmem, size = 0x10000, scoped, tag = 'input window, operand 1, single buffered']
    #allocation6 [shape = 's32[1]{0}', space=sflag, size = 0x4, scoped, tag = 'scoped memory for tpu_custom_call.1']
    #allocation7 [shape = 'u8[512]{0}', space=vmem, size = 0x400, scoped, tag = 'output window, operand 0, single buffered']
    %7 = vsyncpa [#allocation3], 0
    %8 = vsyncpa [#allocation6], 0
    %9 = vsyncpa [#allocation4], 0
    // Predicated region
    $region2: #{tpu_custom_call.1} parent=1 // pred_check
      _
    $region3: #{tpu_custom_call.1} parent=1 // pred_check_branch
      %11 = sbr.rel (0) target = $region5
    $region4: #{tpu_custom_call.1} parent=1 // pred_region
      %13 = vsyncadd [#allocation3], 0
      %s15 = sshll.u32 %s0, 4
      %s16 = int_to_ptr.hbm [resolvable:$true] %s15
      %s17 = sshll.u32 [#allocation2], 4
      %s18 = int_to_ptr.vmem [resolvable:$true] %s17
      %20 = dma.hbm_to_vmem [thread:$0]  %s16, 16, %s18, [#allocation3]
    $region5: #{tpu_custom_call.1} parent=1 // pred_fallthru
      _
    // Predicated region
    $region6: #{tpu_custom_call.1} parent=1 // pred_check
      _
    $region7: #{tpu_custom_call.1} parent=1 // pred_check_branch
      %22 = sbr.rel (0) target = $region9
    $region8: #{tpu_custom_call.1} parent=1 // pred_region
      %24 = vsyncadd [#allocation6], 0
      %s25 = sshll.u32 %s1, 4
      %s26 = int_to_ptr.hbm [resolvable:$true] %s25
      %s27 = sshll.u32 [#allocation5], 4
      %s28 = int_to_ptr.vmem [resolvable:$true] %s27
      %33 = dma.hbm_to_vmem [thread:$0]  %s26, 2048, %s28, [#allocation6], 128, 128, 8
    $region9: #{tpu_custom_call.1} parent=1 // pred_fallthru
      _
    // Predicated region
    $region10: #{tpu_custom_call.1} parent=1 // pred_check
      _
    $region11: #{tpu_custom_call.1} parent=1 // pred_check_branch
      %35 = sbr.rel (0) target = $region13
    $region12: #{tpu_custom_call.1} parent=1 // pred_region
      %37 = dma.done [#allocation3], 16
    $region13: #{tpu_custom_call.1} parent=1 // pred_fallthru
      _
    // Predicated region
    $region14: #{tpu_custom_call.1} parent=1 // pred_check
      _
    $region15: #{tpu_custom_call.1} parent=1 // pred_check_branch
      %39 = sbr.rel (0) target = $region17
    $region16: #{tpu_custom_call.1} parent=1 // pred_region
      %41 = dma.done [#allocation6], 2048
    $region17: #{tpu_custom_call.1} parent=1 // pred_fallthru
      _
    %v42 = vld [vmem:[#allocation2] sm:$0x1]
    %v43 = vmul.f32 %v42, 50.0
    %v44 = vcvt.f32.s32.ties.to.even %v43
    %vm45 = vcmp.gt.s32.totalorder %v44, 0
    %v46 = vsel %vm45, %v44, 0
    %vm47 = vcmp.lt.s32.totalorder %v46, 50
    %v48 = vsel %vm47, %v46, 50
    %v49 = vlaneseq
    %v50 = vshrl.u32 %v49, 7
    %v51 = vadd.s32 %v50, 8
    %v52 = vadd.s32 %v50, 16
    %v53 = vadd.s32 %v50, 24
    %v54 = vadd.s32 %v50, 32
    %v55 = vadd.s32 %v50, 40
    %v56 = vadd.s32 %v50, 48
    %v57 = vadd.s32 %v50, 56
    %v58 = vadd.s32 %v50, 64
    %v59 = vadd.s32 %v50, 72
    %v60 = vadd.s32 %v50, 80
    %v61 = vadd.s32 %v50, 88
    %v62 = vadd.s32 %v50, 96
    %v63 = vadd.s32 %v50, 104
    %v64 = vadd.s32 %v50, 112
    %v65 = vadd.s32 %v50, 120
    %v66 = vld [vmem:[#allocation5] sm:$0xff]
    %v67 = vld [vmem:[#allocation5 + $0x8] sm:$0xff]
    %v68 = vld [vmem:[#allocation5 + $0x10] sm:$0xff]
    %v69 = vld [vmem:[#allocation5 + $0x18] sm:$0xff]
    %v70 = vld [vmem:[#allocation5 + $0x20] sm:$0xff]
    %v71 = vld [vmem:[#allocation5 + $0x28] sm:$0xff]
    %v72 = vld [vmem:[#allocation5 + $0x30] sm:$0xff]
    %v73 = vld [vmem:[#allocation5 + $0x38] sm:$0xff]
    %v74 = vld [vmem:[#allocation5 + $0x40] sm:$0xff]
    %v75 = vld [vmem:[#allocation5 + $0x48] sm:$0xff]
    %v76 = vld [vmem:[#allocation5 + $0x50] sm:$0xff]
    %v77 = vld [vmem:[#allocation5 + $0x58] sm:$0xff]
    %v78 = vld [vmem:[#allocation5 + $0x60] sm:$0xff]
    %v79 = vld [vmem:[#allocation5 + $0x68] sm:$0xff]
    %v80 = vld [vmem:[#allocation5 + $0x70] sm:$0xff]
    %v81 = vld [vmem:[#allocation5 + $0x78] sm:$0xff]
    %v82 = vperm.slane %v48, 0
    %vm83 = vcmp.eq.s32.totalorder %v82, %v50
    %vm84 = vcmp.eq.s32.totalorder %v82, %v51
    %vm85 = vcmp.eq.s32.totalorder %v82, %v52
    %vm86 = vcmp.eq.s32.totalorder %v82, %v53
    %vm87 = vcmp.eq.s32.totalorder %v82, %v54
    %vm88 = vcmp.eq.s32.totalorder %v82, %v55
    %vm89 = vcmp.eq.s32.totalorder %v82, %v56
    %vm90 = vcmp.eq.s32.totalorder %v82, %v57
    %vm91 = vcmp.eq.s32.totalorder %v82, %v58
    %vm92 = vcmp.eq.s32.totalorder %v82, %v59
    %vm93 = vcmp.eq.s32.totalorder %v82, %v60
    %vm94 = vcmp.eq.s32.totalorder %v82, %v61
    %vm95 = vcmp.eq.s32.totalorder %v82, %v62
    %vm96 = vcmp.eq.s32.totalorder %v82, %v63
    %vm97 = vcmp.eq.s32.totalorder %v82, %v64
    %vm98 = vcmp.eq.s32.totalorder %v82, %v65
    %v99 = vsel %vm83, %v66, 0.0
    %v100 = vsel %vm84, %v67, 0.0
    %v101 = vsel %vm85, %v68, 0.0
    %v102 = vsel %vm86, %v69, 0.0
    %v103 = vsel %vm87, %v70, 0.0
    %v104 = vsel %vm88, %v71, 0.0
    %v105 = vsel %vm89, %v72, 0.0
    %v106 = vsel %vm90, %v73, 0.0
    %v107 = vsel %vm91, %v74, 0.0
    %v108 = vsel %vm92, %v75, 0.0
    %v109 = vsel %vm93, %v76, 0.0
    %v110 = vsel %vm94, %v77, 0.0
    %v111 = vsel %vm95, %v78, 0.0
    %v112 = vsel %vm96, %v79, 0.0
    %v113 = vsel %vm97, %v80, 0.0
    %v114 = vsel %vm98, %v81, 0.0
    %v115 = vadd.f32 %v99, %v100
    %v116 = vadd.f32 %v115, %v101
    %v117 = vadd.f32 %v116, %v102
    %v118 = vadd.f32 %v117, %v103
    %v119 = vadd.f32 %v118, %v104
    %v120 = vadd.f32 %v119, %v105
    %v121 = vadd.f32 %v120, %v106
    %v122 = vadd.f32 %v121, %v107
    %v123 = vadd.f32 %v122, %v108
    %v124 = vadd.f32 %v123, %v109
    %v125 = vadd.f32 %v124, %v110
    %v126 = vadd.f32 %v125, %v111
    %v127 = vadd.f32 %v126, %v112
    %v128 = vadd.f32 %v127, %v113
    %v129 = vadd.f32 %v128, %v114
    %v130 = vrot.slane %v129, 4
    %v131 = vadd.f32 %v129, %v130
    %v132 = vrot.slane %v131, 2
    %v133 = vadd.f32 %v131, %v132
    %v134 = vrot.slane %v133, 1
    %v135 = vadd.f32 %v133, %v134
    %136 = vst [vmem:[#allocation7] sm:$0x1] %v135
    // Predicated region
    $region18: #{tpu_custom_call.1} parent=1 // pred_check
      _
    $region19: #{tpu_custom_call.1} parent=1 // pred_check_branch
      %138 = sbr.rel (0) target = $region21
    $region20: #{tpu_custom_call.1} parent=1 // pred_region
      %140 = vsyncadd [#allocation4], 0
      %s142 = sshll.u32 [#allocation7], 4
      %s143 = int_to_ptr.vmem [resolvable:$true] %s142
      %s144 = sshll.u32 %s2, 4
      %s145 = int_to_ptr.hbm [resolvable:$true] %s144
      %147 = dma.vmem_to_hbm [thread:$0]  %s143, 16, %s145, [#allocation4]
    $region21: #{tpu_custom_call.1} parent=1 // pred_fallthru
      _
    // Predicated region
    $region22: #{tpu_custom_call.1} parent=1 // pred_check
      _
    $region23: #{tpu_custom_call.1} parent=1 // pred_check_branch
      %149 = sbr.rel (0) target = $region25
    $region24: #{tpu_custom_call.1} parent=1 // pred_region
      %151 = dma.done [#allocation4], 16
    $region25: #{tpu_custom_call.1} parent=1 // pred_fallthru
      _
    %152 = vsyncpa [#allocation3], 1
    %153 = vsyncpa [#allocation6], 1
    %154 = vsyncpa [#allocation4], 1

</llo_original>
